<compile_context>
chip_gen: v7x
topology: tpu7x:2x2x1
jax: 0.10.0
libtpu: 0.0.40
codegen_flags: <defaults>
</compile_context>

<pallas_src>
import functools

import jax
import jax.numpy as jnp
from jax.experimental import pallas as pl
from jax.experimental.pallas import tpu as pltpu

EPS = 1e-5
LANE = 128


def _round_up(n, m=LANE):
    return ((n + m - 1) // m) * m


# ---------------------------------------------------------------------------
# Fused kernel: all layers in one pallas_call, everything VMEM-resident.
# ---------------------------------------------------------------------------
def _fused_dnn_kernel(n_hidden, x_ref, *refs):
    # refs = [w0, b0, g0, beta0, w1, b1, g1, beta1, ..., w_final, b_final, o_ref]
    # x: (B, P)   w: (P, P)   b/g/beta: (1, P)   o: (B, P)      (P = 128-padded width)
    o_ref = refs[-1]
    params = refs[:-1]

    x = x_ref[...]
    idx = 0
    for _ in range(n_hidden):
        w = params[idx][...]
        b = params[idx + 1][...]
        g = params[idx + 2][...]
        beta = params[idx + 3][...]
        idx += 4

        y = jnp.dot(x, w, preferred_element_type=jnp.float32) + b   # Linear
        y = jnp.maximum(y, 0.0)                                     # ReLU
        # BatchNorm1d (training forward): per-feature batch mean / biased variance.
        mean = jnp.mean(y, axis=0, keepdims=True)
        var = jnp.mean((y - mean) ** 2, axis=0, keepdims=True)
        scale = g * jax.lax.rsqrt(var + EPS)      # gamma folded into the norm scale
        x = (y - mean) * scale + beta

    w_f = params[idx][...]
    b_f = params[idx + 1][...]
    o_ref[...] = jnp.dot(x, w_f, preferred_element_type=jnp.float32) + b_f


# ---------------------------------------------------------------------------
# Wrapper: single pallas_call, no grid, full-array VMEM specs.
# ---------------------------------------------------------------------------
def dnn_forward(padded_params, x, output_size):
    B, din = x.shape
    P = padded_params["pad_width"]

    x_p = jnp.zeros((B, P), jnp.float32).at[:, :din].set(x)

    flat = []
    for layer in padded_params["hidden"]:
        flat += [layer["w"], layer["b"], layer["gamma"], layer["beta"]]
    flat += [padded_params["final"]["w"], padded_params["final"]["b"]]

    n_hidden = len(padded_params["hidden"])
    vmem_spec = pl.BlockSpec(memory_space=pltpu.MemorySpace.VMEM)

    out_p = pl.pallas_call(
        functools.partial(_fused_dnn_kernel, n_hidden),
        out_shape=jax.ShapeDtypeStruct((B, P), jnp.float32),
        in_specs=[vmem_spec] * (1 + len(flat)),
        out_specs=vmem_spec,
    )(x_p, *flat)

    return out_p[:, :output_size]


# ---------------------------------------------------------------------------
# Parameter construction (deterministic, mirrors the PyTorch __init__)
# ---------------------------------------------------------------------------
def _xavier_uniform(key, fan_in, fan_out):
    # torch.nn.init.xavier_uniform_ on a (out, in) weight; stored transposed (in, out).
    limit = (6.0 / (fan_in + fan_out)) ** 0.5
    return jax.random.uniform(
        key, (fan_in, fan_out), jnp.float32, minval=-limit, maxval=limit
    )


def _linear_bias(key, fan_in, fan_out):
    # default torch Linear bias init: U(-1/sqrt(fan_in), 1/sqrt(fan_in))
    bound = 1.0 / (fan_in ** 0.5)
    return jax.random.uniform(
        key, (1, fan_out), jnp.float32, minval=-bound, maxval=bound
    )


def init_dnn_params(key, input_size, n_layer, n_l1, n_l2, n_l3, n_l4, output_size=1):
    """Unpadded parameters, matching the PyTorch module's layer structure."""
    n_hidden = [n_l1, n_l2, n_l3, n_l4]
    dims = [input_size, n_l1] + [n_hidden[i + 1] for i in range(n_layer)]
    params = {"hidden": [], "final": None}
    for i in range(len(dims) - 1):
        key, kw, kb = jax.random.split(key, 3)
        din, dout = dims[i], dims[i + 1]
        params["hidden"].append(
            dict(
                w=_xavier_uniform(kw, din, dout),
                b=_linear_bias(kb, din, dout),
                gamma=jnp.ones((1, dout), jnp.float32),   # BN weight <- 1
                beta=jnp.zeros((1, dout), jnp.float32),   # BN bias   <- 0
            )
        )
    key, kw, kb = jax.random.split(key, 3)
    din = n_hidden[n_layer]
    params["final"] = dict(
        w=_xavier_uniform(kw, din, output_size),
        b=_linear_bias(kb, din, output_size),
    )
    return params


def pad_dnn_params(params):
    """Zero-pad every feature dimension to a lane-dense common width (multiple of 128).

    Padded W columns/rows, biases, gamma and beta are zero, so padded activation
    lanes are exactly zero through every layer and never perturb real features.
    """
    dims = [params["hidden"][0]["w"].shape[0]]
    for layer in params["hidden"]:
        dims.append(layer["w"].shape[1])
    dims.append(params["final"]["w"].shape[1])
    P = _round_up(max(dims))

    def pad_mat(w):
        din, dout = w.shape
        return jnp.zeros((P, P), jnp.float32).at[:din, :dout].set(w)

    def pad_row(r):
        return jnp.zeros((1, P), jnp.float32).at[:, : r.shape[1]].set(r)

    padded = {"pad_width": P, "hidden": [], "final": None}
    for layer in params["hidden"]:
        padded["hidden"].append(
            dict(
                w=pad_mat(layer["w"]),
                b=pad_row(layer["b"]),
                gamma=pad_row(layer["gamma"]),
                beta=pad_row(layer["beta"]),
            )
        )
    padded["final"] = dict(
        w=pad_mat(params["final"]["w"]),
        b=pad_row(params["final"]["b"]),
    )
    return padded


# ---------------------------------------------------------------------------
# Reference (pure JAX, unpadded) for a sanity check
# ---------------------------------------------------------------------------
def dnn_forward_ref(params, x):
    for layer in params["hidden"]:
        y = x @ layer["w"] + layer["b"]
        y = jnp.maximum(y, 0.0)
        mean = jnp.mean(y, axis=0, keepdims=True)
        var = jnp.mean((y - mean) ** 2, axis=0, keepdims=True)
        x = (y - mean) / jnp.sqrt(var + EPS) * layer["gamma"] + layer["beta"]
    return x @ params["final"]["w"] + params["final"]["b"]


if __name__ == "__main__":
    # Small config consistent with the module: dnn(input_size=32, n_layer=2,
    # n_l1=64, n_l2=32, n_l3=16, n_l4=8, dropout=0.0, output_size=1)
    input_size, n_layer = 32, 2
    n_l1, n_l2, n_l3, n_l4 = 64, 32, 16, 8
    output_size = 1
    batch = 16

    key = jax.random.PRNGKey(0)
    key_p, key_x = jax.random.split(key)
    params = init_dnn_params(
        key_p, input_size, n_layer, n_l1, n_l2, n_l3, n_l4, output_size
    )
    padded_params = pad_dnn_params(params)
    x = jax.random.normal(key_x, (batch, input_size), jnp.float32)

    out = dnn_forward(padded_params, x, output_size)
    out = jax.block_until_ready(out)

    ref = dnn_forward_ref(params, x)
    assert out.shape == (batch, output_size)
    assert jnp.allclose(out, ref, atol=1e-4, rtol=1e-4)

    print("KERNEL_OK")
</pallas_src>

<mosaic_0001>
module attributes {stable_mosaic.version = 11 : i64} {
  func.func @_fused_dnn_kernel(%arg0: memref<16x128xf32, #tpu.memory_space<vmem>>, %arg1: memref<128x128xf32, #tpu.memory_space<vmem>>, %arg2: memref<1x128xf32, #tpu.memory_space<vmem>>, %arg3: memref<1x128xf32, #tpu.memory_space<vmem>>, %arg4: memref<1x128xf32, #tpu.memory_space<vmem>>, %arg5: memref<128x128xf32, #tpu.memory_space<vmem>>, %arg6: memref<1x128xf32, #tpu.memory_space<vmem>>, %arg7: memref<1x128xf32, #tpu.memory_space<vmem>>, %arg8: memref<1x128xf32, #tpu.memory_space<vmem>>, %arg9: memref<128x128xf32, #tpu.memory_space<vmem>>, %arg10: memref<1x128xf32, #tpu.memory_space<vmem>>, %arg11: memref<1x128xf32, #tpu.memory_space<vmem>>, %arg12: memref<1x128xf32, #tpu.memory_space<vmem>>, %arg13: memref<128x128xf32, #tpu.memory_space<vmem>>, %arg14: memref<1x128xf32, #tpu.memory_space<vmem>>, %arg15: memref<16x128xf32, #tpu.memory_space<vmem>>) attributes {dimension_semantics = [], scalar_prefetch = 0 : i64, scratch_operands = 0 : i64, tpu.core_type = #tpu.core_type<tc>} {
    %c0 = arith.constant 0 : index
    %c0_0 = arith.constant 0 : index
    %0 = vector.load %arg0[%c0, %c0_0] : memref<16x128xf32, #tpu.memory_space<vmem>>, vector<16x128xf32>
    %c0_1 = arith.constant 0 : index
    %c0_2 = arith.constant 0 : index
    %1 = vector.load %arg1[%c0_1, %c0_2] : memref<128x128xf32, #tpu.memory_space<vmem>>, vector<128x128xf32>
    %c0_3 = arith.constant 0 : index
    %c0_4 = arith.constant 0 : index
    %2 = vector.load %arg2[%c0_3, %c0_4] : memref<1x128xf32, #tpu.memory_space<vmem>>, vector<1x128xf32>
    %c0_5 = arith.constant 0 : index
    %c0_6 = arith.constant 0 : index
    %3 = vector.load %arg3[%c0_5, %c0_6] : memref<1x128xf32, #tpu.memory_space<vmem>>, vector<1x128xf32>
    %c0_7 = arith.constant 0 : index
    %c0_8 = arith.constant 0 : index
    %4 = vector.load %arg4[%c0_7, %c0_8] : memref<1x128xf32, #tpu.memory_space<vmem>>, vector<1x128xf32>
    %cst = arith.constant dense<0.000000e+00> : vector<16x128xf32>
    %5 = tpu.matmul %0, %1, %cst {dimension_numbers = #tpu.dot_dimension_numbers<[1], [0], [0], [1], [0, 0, 1, 1], [], []>} : vector<16x128xf32>, vector<128x128xf32>, vector<16x128xf32> -> vector<16x128xf32>
    %6 = vector.broadcast %2 : vector<1x128xf32> to vector<16x128xf32>
    %7 = arith.addf %5, %6 : vector<16x128xf32>
    %cst_9 = arith.constant 0.000000e+00 : f32
    %8 = vector.broadcast %cst_9 : f32 to vector<16x128xf32>
    %9 = arith.maximumf %7, %8 : vector<16x128xf32>
    %cst_10 = arith.constant dense<0.000000e+00> : vector<128xf32>
    %10 = vector.multi_reduction <add>, %9, %cst_10 [0] : vector<16x128xf32> to vector<128xf32>
    %11 = vector.shape_cast %10 : vector<128xf32> to vector<1x128xf32>
    %cst_11 = arith.constant 1.600000e+01 : f32
    %12 = vector.broadcast %cst_11 : f32 to vector<1x128xf32>
    %13 = arith.divf %11, %12 : vector<1x128xf32>
    %14 = vector.broadcast %13 : vector<1x128xf32> to vector<16x128xf32>
    %15 = arith.subf %9, %14 : vector<16x128xf32>
    %16 = arith.mulf %15, %15 : vector<16x128xf32>
    %cst_12 = arith.constant dense<0.000000e+00> : vector<128xf32>
    %17 = vector.multi_reduction <add>, %16, %cst_12 [0] : vector<16x128xf32> to vector<128xf32>
    %18 = vector.shape_cast %17 : vector<128xf32> to vector<1x128xf32>
    %cst_13 = arith.constant 1.600000e+01 : f32
    %19 = vector.broadcast %cst_13 : f32 to vector<1x128xf32>
    %20 = arith.divf %18, %19 : vector<1x128xf32>
    %cst_14 = arith.constant 9.99999974E-6 : f32
    %21 = vector.broadcast %cst_14 : f32 to vector<1x128xf32>
    %22 = arith.addf %20, %21 : vector<1x128xf32>
    %23 = math.rsqrt %22 : vector<1x128xf32>
    %24 = arith.mulf %3, %23 : vector<1x128xf32>
    %25 = vector.broadcast %13 : vector<1x128xf32> to vector<16x128xf32>
    %26 = arith.subf %9, %25 : vector<16x128xf32>
    %27 = vector.broadcast %24 : vector<1x128xf32> to vector<16x128xf32>
    %28 = arith.mulf %26, %27 : vector<16x128xf32>
    %29 = vector.broadcast %4 : vector<1x128xf32> to vector<16x128xf32>
    %30 = arith.addf %28, %29 : vector<16x128xf32>
    %c0_15 = arith.constant 0 : index
    %c0_16 = arith.constant 0 : index
    %31 = vector.load %arg5[%c0_15, %c0_16] : memref<128x128xf32, #tpu.memory_space<vmem>>, vector<128x128xf32>
    %c0_17 = arith.constant 0 : index
    %c0_18 = arith.constant 0 : index
    %32 = vector.load %arg6[%c0_17, %c0_18] : memref<1x128xf32, #tpu.memory_space<vmem>>, vector<1x128xf32>
    %c0_19 = arith.constant 0 : index
    %c0_20 = arith.constant 0 : index
    %33 = vector.load %arg7[%c0_19, %c0_20] : memref<1x128xf32, #tpu.memory_space<vmem>>, vector<1x128xf32>
    %c0_21 = arith.constant 0 : index
    %c0_22 = arith.constant 0 : index
    %34 = vector.load %arg8[%c0_21, %c0_22] : memref<1x128xf32, #tpu.memory_space<vmem>>, vector<1x128xf32>
    %cst_23 = arith.constant dense<0.000000e+00> : vector<16x128xf32>
    %35 = tpu.matmul %30, %31, %cst_23 {dimension_numbers = #tpu.dot_dimension_numbers<[1], [0], [0], [1], [0, 0, 1, 1], [], []>} : vector<16x128xf32>, vector<128x128xf32>, vector<16x128xf32> -> vector<16x128xf32>
    %36 = vector.broadcast %32 : vector<1x128xf32> to vector<16x128xf32>
    %37 = arith.addf %35, %36 : vector<16x128xf32>
    %cst_24 = arith.constant 0.000000e+00 : f32
    %38 = vector.broadcast %cst_24 : f32 to vector<16x128xf32>
    %39 = arith.maximumf %37, %38 : vector<16x128xf32>
    %cst_25 = arith.constant dense<0.000000e+00> : vector<128xf32>
    %40 = vector.multi_reduction <add>, %39, %cst_25 [0] : vector<16x128xf32> to vector<128xf32>
    %41 = vector.shape_cast %40 : vector<128xf32> to vector<1x128xf32>
    %cst_26 = arith.constant 1.600000e+01 : f32
    %42 = vector.broadcast %cst_26 : f32 to vector<1x128xf32>
    %43 = arith.divf %41, %42 : vector<1x128xf32>
    %44 = vector.broadcast %43 : vector<1x128xf32> to vector<16x128xf32>
    %45 = arith.subf %39, %44 : vector<16x128xf32>
    %46 = arith.mulf %45, %45 : vector<16x128xf32>
    %cst_27 = arith.constant dense<0.000000e+00> : vector<128xf32>
    %47 = vector.multi_reduction <add>, %46, %cst_27 [0] : vector<16x128xf32> to vector<128xf32>
    %48 = vector.shape_cast %47 : vector<128xf32> to vector<1x128xf32>
    %cst_28 = arith.constant 1.600000e+01 : f32
    %49 = vector.broadcast %cst_28 : f32 to vector<1x128xf32>
    %50 = arith.divf %48, %49 : vector<1x128xf32>
    %cst_29 = arith.constant 9.99999974E-6 : f32
    %51 = vector.broadcast %cst_29 : f32 to vector<1x128xf32>
    %52 = arith.addf %50, %51 : vector<1x128xf32>
    %53 = math.rsqrt %52 : vector<1x128xf32>
    %54 = arith.mulf %33, %53 : vector<1x128xf32>
    %55 = vector.broadcast %43 : vector<1x128xf32> to vector<16x128xf32>
    %56 = arith.subf %39, %55 : vector<16x128xf32>
    %57 = vector.broadcast %54 : vector<1x128xf32> to vector<16x128xf32>
    %58 = arith.mulf %56, %57 : vector<16x128xf32>
    %59 = vector.broadcast %34 : vector<1x128xf32> to vector<16x128xf32>
    %60 = arith.addf %58, %59 : vector<16x128xf32>
    %c0_30 = arith.constant 0 : index
    %c0_31 = arith.constant 0 : index
    %61 = vector.load %arg9[%c0_30, %c0_31] : memref<128x128xf32, #tpu.memory_space<vmem>>, vector<128x128xf32>
    %c0_32 = arith.constant 0 : index
    %c0_33 = arith.constant 0 : index
    %62 = vector.load %arg10[%c0_32, %c0_33] : memref<1x128xf32, #tpu.memory_space<vmem>>, vector<1x128xf32>
    %c0_34 = arith.constant 0 : index
    %c0_35 = arith.constant 0 : index
    %63 = vector.load %arg11[%c0_34, %c0_35] : memref<1x128xf32, #tpu.memory_space<vmem>>, vector<1x128xf32>
    %c0_36 = arith.constant 0 : index
    %c0_37 = arith.constant 0 : index
    %64 = vector.load %arg12[%c0_36, %c0_37] : memref<1x128xf32, #tpu.memory_space<vmem>>, vector<1x128xf32>
    %cst_38 = arith.constant dense<0.000000e+00> : vector<16x128xf32>
    %65 = tpu.matmul %60, %61, %cst_38 {dimension_numbers = #tpu.dot_dimension_numbers<[1], [0], [0], [1], [0, 0, 1, 1], [], []>} : vector<16x128xf32>, vector<128x128xf32>, vector<16x128xf32> -> vector<16x128xf32>
    %66 = vector.broadcast %62 : vector<1x128xf32> to vector<16x128xf32>
    %67 = arith.addf %65, %66 : vector<16x128xf32>
    %cst_39 = arith.constant 0.000000e+00 : f32
    %68 = vector.broadcast %cst_39 : f32 to vector<16x128xf32>
    %69 = arith.maximumf %67, %68 : vector<16x128xf32>
    %cst_40 = arith.constant dense<0.000000e+00> : vector<128xf32>
    %70 = vector.multi_reduction <add>, %69, %cst_40 [0] : vector<16x128xf32> to vector<128xf32>
    %71 = vector.shape_cast %70 : vector<128xf32> to vector<1x128xf32>
    %cst_41 = arith.constant 1.600000e+01 : f32
    %72 = vector.broadcast %cst_41 : f32 to vector<1x128xf32>
    %73 = arith.divf %71, %72 : vector<1x128xf32>
    %74 = vector.broadcast %73 : vector<1x128xf32> to vector<16x128xf32>
    %75 = arith.subf %69, %74 : vector<16x128xf32>
    %76 = arith.mulf %75, %75 : vector<16x128xf32>
    %cst_42 = arith.constant dense<0.000000e+00> : vector<128xf32>
    %77 = vector.multi_reduction <add>, %76, %cst_42 [0] : vector<16x128xf32> to vector<128xf32>
    %78 = vector.shape_cast %77 : vector<128xf32> to vector<1x128xf32>
    %cst_43 = arith.constant 1.600000e+01 : f32
    %79 = vector.broadcast %cst_43 : f32 to vector<1x128xf32>
    %80 = arith.divf %78, %79 : vector<1x128xf32>
    %cst_44 = arith.constant 9.99999974E-6 : f32
    %81 = vector.broadcast %cst_44 : f32 to vector<1x128xf32>
    %82 = arith.addf %80, %81 : vector<1x128xf32>
    %83 = math.rsqrt %82 : vector<1x128xf32>
    %84 = arith.mulf %63, %83 : vector<1x128xf32>
    %85 = vector.broadcast %73 : vector<1x128xf32> to vector<16x128xf32>
    %86 = arith.subf %69, %85 : vector<16x128xf32>
    %87 = vector.broadcast %84 : vector<1x128xf32> to vector<16x128xf32>
    %88 = arith.mulf %86, %87 : vector<16x128xf32>
    %89 = vector.broadcast %64 : vector<1x128xf32> to vector<16x128xf32>
    %90 = arith.addf %88, %89 : vector<16x128xf32>
    %c0_45 = arith.constant 0 : index
    %c0_46 = arith.constant 0 : index
    %91 = vector.load %arg13[%c0_45, %c0_46] : memref<128x128xf32, #tpu.memory_space<vmem>>, vector<128x128xf32>
    %c0_47 = arith.constant 0 : index
    %c0_48 = arith.constant 0 : index
    %92 = vector.load %arg14[%c0_47, %c0_48] : memref<1x128xf32, #tpu.memory_space<vmem>>, vector<1x128xf32>
    %cst_49 = arith.constant dense<0.000000e+00> : vector<16x128xf32>
    %93 = tpu.matmul %90, %91, %cst_49 {dimension_numbers = #tpu.dot_dimension_numbers<[1], [0], [0], [1], [0, 0, 1, 1], [], []>} : vector<16x128xf32>, vector<128x128xf32>, vector<16x128xf32> -> vector<16x128xf32>
    %94 = vector.broadcast %92 : vector<1x128xf32> to vector<16x128xf32>
    %95 = arith.addf %93, %94 : vector<16x128xf32>
    %c0_50 = arith.constant 0 : index
    %c0_51 = arith.constant 0 : index
    %96 = vector.load %arg15[%c0_50, %c0_51] : memref<16x128xf32, #tpu.memory_space<vmem>>, vector<16x128xf32>
    tpu.vector_store %arg15[%c0_50, %c0_51], %95 {strides = array<i32>} : memref<16x128xf32, #tpu.memory_space<vmem>>, vector<16x128xf32>,
    return
  }
}

</mosaic_0001>

<llo_original>
// kernel: tpu_custom_call.1
$region0: #{tpu_custom_call.1}
  #allocation0 [shape = 'u32[]', space=smem, size = 0x4, offset = 0x4, fixed_abs, tag = 'smem constant byte address 0x4 - core index']
  #allocation1 [shape = 'u32[144,128]{1,0:T(1,128)}', space=vmem, size = 0x12000, scoped, tag = 'internal scratch']
  %s0 = inlined_call_operand.hbm [shape: f32[16,128], index: 0, kind: input, shape index: {}]
  %s1 = inlined_call_operand.hbm [shape: f32[128,128], index: 1, kind: input, shape index: {}]
  %s2 = inlined_call_operand.vmem [shape: f32[1,128], index: 2, kind: input, shape index: {}]
  %s3 = inlined_call_operand.vmem [shape: f32[1,128], index: 3, kind: input, shape index: {}]
  %s4 = inlined_call_operand.vmem [shape: f32[1,128], index: 4, kind: input, shape index: {}]
  %s5 = inlined_call_operand.hbm [shape: f32[128,128], index: 5, kind: input, shape index: {}]
  %s6 = inlined_call_operand.vmem [shape: f32[1,128], index: 6, kind: input, shape index: {}]
  %s7 = inlined_call_operand.vmem [shape: f32[1,128], index: 7, kind: input, shape index: {}]
  %s8 = inlined_call_operand.vmem [shape: f32[1,128], index: 8, kind: input, shape index: {}]
  %s9 = inlined_call_operand.hbm [shape: f32[128,128], index: 9, kind: input, shape index: {}]
  %s10 = inlined_call_operand.vmem [shape: f32[1,128], index: 10, kind: input, shape index: {}]
  %s11 = inlined_call_operand.vmem [shape: f32[1,128], index: 11, kind: input, shape index: {}]
  %s12 = inlined_call_operand.vmem [shape: f32[1,128], index: 12, kind: input, shape index: {}]
  %s13 = inlined_call_operand.hbm [shape: f32[128,128], index: 13, kind: input, shape index: {}]
  %s14 = inlined_call_operand.vmem [shape: f32[1,128], index: 14, kind: input, shape index: {}]
  %s15 = inlined_call_operand.hbm [shape: f32[16,128], index: 15, kind: output, shape index: {}]
  %s16 = sld [smem:[#allocation0]]
  $region90: #{tpu_custom_call.1} parent=0
    _
  %s18 = ssub.s32 1, %s16
  %s19 = scalar_select 0, %s18, %s16
  $region1: #{tpu_custom_call.1} parent=0
    #allocation2 [shape = 'u8[8192]{0}', space=vmem, size = 0x2000, scoped, tag = 'input window, operand 0, single buffered']
    #allocation3 [shape = 's32[1]{0}', space=sflag, size = 0x4, scoped, tag = 'scoped memory for tpu_custom_call.1']
    #allocation4 [shape = 's32[1]{0}', space=sflag, size = 0x4, scoped, tag = 'scoped memory for tpu_custom_call.1']
    #allocation5 [shape = 'u8[65536]{0}', space=vmem, size = 0x10000, scoped, tag = 'input window, operand 1, single buffered']
    #allocation6 [shape = 's32[1]{0}', space=sflag, size = 0x4, scoped, tag = 'scoped memory for tpu_custom_call.1']
    #allocation7 [shape = 'u8[65536]{0}', space=vmem, size = 0x10000, scoped, tag = 'input window, operand 5, single buffered']
    #allocation8 [shape = 'u8[65536]{0}', space=vmem, size = 0x10000, scoped, tag = 'input window, operand 9, single buffered']
    #allocation9 [shape = 's32[1]{0}', space=sflag, size = 0x4, scoped, tag = 'scoped memory for tpu_custom_call.1']
    #allocation10 [shape = 'u8[65536]{0}', space=vmem, size = 0x10000, scoped, tag = 'input window, operand 13, single buffered']
    #allocation11 [shape = 'u8[8192]{0}', space=vmem, size = 0x2000, scoped, tag = 'output window, operand 0, single buffered']
    %20 = vsyncpa [#allocation3], 0
    %21 = vsyncpa [#allocation6], 0
    %22 = vsyncpa [#allocation9], 0
    %23 = vsyncpa [#allocation4], 0
    // Predicated region
    $region2: #{tpu_custom_call.1} parent=1 // pred_check
      _
    $region3: #{tpu_custom_call.1} parent=1 // pred_check_branch
      %25 = sbr.rel (0) target = $region5
    $region4: #{tpu_custom_call.1} parent=1 // pred_region
      %s27 = ssub.s32 256, 256
      %28 = vsyncadd [#allocation3], %s27
      %s29 = sshll.u32 [#allocation2], 4
      %s30 = int_to_ptr.vmem [resolvable:$true] %s29
      %35 = dma.hbm_to_vmem [thread:$0]  %s0, 256, %s30, [#allocation3], 128, 128, 8
    $region5: #{tpu_custom_call.1} parent=1 // pred_fallthru
      _
    // Predicated region
    $region6: #{tpu_custom_call.1} parent=1 // pred_check
      _
    $region7: #{tpu_custom_call.1} parent=1 // pred_check_branch
      %37 = sbr.rel (0) target = $region9
    $region8: #{tpu_custom_call.1} parent=1 // pred_region
      %s39 = ssub.s32 2048, 2048
      %40 = vsyncadd [#allocation6], %s39
      %s41 = sshll.u32 [#allocation5], 4
      %s42 = int_to_ptr.vmem [resolvable:$true] %s41
      %47 = dma.hbm_to_vmem [thread:$0]  %s1, 2048, %s42, [#allocation6], 128, 128, 8
    $region9: #{tpu_custom_call.1} parent=1 // pred_fallthru
      _
    // Predicated region
    $region10: #{tpu_custom_call.1} parent=1 // pred_check
      _
    $region11: #{tpu_custom_call.1} parent=1 // pred_check_branch
      %49 = sbr.rel (0) target = $region13
    $region12: #{tpu_custom_call.1} parent=1 // pred_region
      _
    $region13: #{tpu_custom_call.1} parent=1 // pred_fallthru
      _
    // Predicated region
    $region14: #{tpu_custom_call.1} parent=1 // pred_check
      _
    $region15: #{tpu_custom_call.1} parent=1 // pred_check_branch
      %51 = sbr.rel (0) target = $region17
    $region16: #{tpu_custom_call.1} parent=1 // pred_region
      _
    $region17: #{tpu_custom_call.1} parent=1 // pred_fallthru
      _
    // Predicated region
    $region18: #{tpu_custom_call.1} parent=1 // pred_check
      _
    $region19: #{tpu_custom_call.1} parent=1 // pred_check_branch
      %53 = sbr.rel (0) target = $region21
    $region20: #{tpu_custom_call.1} parent=1 // pred_region
      _
    $region21: #{tpu_custom_call.1} parent=1 // pred_fallthru
      _
    // Predicated region
    $region22: #{tpu_custom_call.1} parent=1 // pred_check
      _
    $region23: #{tpu_custom_call.1} parent=1 // pred_check_branch
      %55 = sbr.rel (0) target = $region25
    $region24: #{tpu_custom_call.1} parent=1 // pred_region
      %s57 = ssub.s32 2048, 2048
      %58 = vsyncadd [#allocation6], %s57
      %s59 = sshll.u32 [#allocation7], 4
      %s60 = int_to_ptr.vmem [resolvable:$true] %s59
      %65 = dma.hbm_to_vmem [thread:$0]  %s5, 2048, %s60, [#allocation6], 128, 128, 8
    $region25: #{tpu_custom_call.1} parent=1 // pred_fallthru
      _
    // Predicated region
    $region26: #{tpu_custom_call.1} parent=1 // pred_check
      _
    $region27: #{tpu_custom_call.1} parent=1 // pred_check_branch
      %67 = sbr.rel (0) target = $region29
    $region28: #{tpu_custom_call.1} parent=1 // pred_region
      _
    $region29: #{tpu_custom_call.1} parent=1 // pred_fallthru
      _
    // Predicated region
    $region30: #{tpu_custom_call.1} parent=1 // pred_check
      _
    $region31: #{tpu_custom_call.1} parent=1 // pred_check_branch
      %69 = sbr.rel (0) target = $region33
    $region32: #{tpu_custom_call.1} parent=1 // pred_region
      _
    $region33: #{tpu_custom_call.1} parent=1 // pred_fallthru
      _
    // Predicated region
    $region34: #{tpu_custom_call.1} parent=1 // pred_check
      _
    $region35: #{tpu_custom_call.1} parent=1 // pred_check_branch
      %71 = sbr.rel (0) target = $region37
    $region36: #{tpu_custom_call.1} parent=1 // pred_region
      _
    $region37: #{tpu_custom_call.1} parent=1 // pred_fallthru
      _
    // Predicated region
    $region38: #{tpu_custom_call.1} parent=1 // pred_check
      _
    $region39: #{tpu_custom_call.1} parent=1 // pred_check_branch
      %73 = sbr.rel (0) target = $region41
    $region40: #{tpu_custom_call.1} parent=1 // pred_region
      %s75 = ssub.s32 2048, 2048
      %76 = vsyncadd [#allocation9], %s75
      %s77 = sshll.u32 [#allocation8], 4
      %s78 = int_to_ptr.vmem [resolvable:$true] %s77
      %83 = dma.hbm_to_vmem [thread:$0]  %s9, 2048, %s78, [#allocation9], 128, 128, 8
    $region41: #{tpu_custom_call.1} parent=1 // pred_fallthru
      _
    // Predicated region
    $region42: #{tpu_custom_call.1} parent=1 // pred_check
      _
    $region43: #{tpu_custom_call.1} parent=1 // pred_check_branch
      %85 = sbr.rel (0) target = $region45
    $region44: #{tpu_custom_call.1} parent=1 // pred_region
      _
    $region45: #{tpu_custom_call.1} parent=1 // pred_fallthru
      _
    // Predicated region
    $region46: #{tpu_custom_call.1} parent=1 // pred_check
      _
    $region47: #{tpu_custom_call.1} parent=1 // pred_check_branch
      %87 = sbr.rel (0) target = $region49
    $region48: #{tpu_custom_call.1} parent=1 // pred_region
      _
    $region49: #{tpu_custom_call.1} parent=1 // pred_fallthru
      _
    // Predicated region
    $region50: #{tpu_custom_call.1} parent=1 // pred_check
      _
    $region51: #{tpu_custom_call.1} parent=1 // pred_check_branch
      %89 = sbr.rel (0) target = $region53
    $region52: #{tpu_custom_call.1} parent=1 // pred_region
      _
    $region53: #{tpu_custom_call.1} parent=1 // pred_fallthru
      _
    // Predicated region
    $region54: #{tpu_custom_call.1} parent=1 // pred_check
      _
    $region55: #{tpu_custom_call.1} parent=1 // pred_check_branch
      %91 = sbr.rel (0) target = $region57
    $region56: #{tpu_custom_call.1} parent=1 // pred_region
      %s93 = ssub.s32 2048, 2048
      %94 = vsyncadd [#allocation9], %s93
      %s95 = sshll.u32 [#allocation10], 4
      %s96 = int_to_ptr.vmem [resolvable:$true] %s95
      %101 = dma.hbm_to_vmem [thread:$0]  %s13, 2048, %s96, [#allocation9], 128, 128, 8
    $region57: #{tpu_custom_call.1} parent=1 // pred_fallthru
      _
    // Predicated region
    $region58: #{tpu_custom_call.1} parent=1 // pred_check
      _
    $region59: #{tpu_custom_call.1} parent=1 // pred_check_branch
      %103 = sbr.rel (0) target = $region61
    $region60: #{tpu_custom_call.1} parent=1 // pred_region
      _
    $region61: #{tpu_custom_call.1} parent=1 // pred_fallthru
      _
    // Predicated region
    $region62: #{tpu_custom_call.1} parent=1 // pred_check
      _
    $region63: #{tpu_custom_call.1} parent=1 // pred_check_branch
      %105 = sbr.rel (0) target = $region65
    $region64: #{tpu_custom_call.1} parent=1 // pred_region
      %106 = dma.done [#allocation3], 256
    $region65: #{tpu_custom_call.1} parent=1 // pred_fallthru
      _
    // Predicated region
    $region66: #{tpu_custom_call.1} parent=1 // pred_check
      _
    $region67: #{tpu_custom_call.1} parent=1 // pred_check_branch
      %108 = sbr.rel (0) target = $region69
    $region68: #{tpu_custom_call.1} parent=1 // pred_region
      %109 = dma.done [#allocation6], 2048
    $region69: #{tpu_custom_call.1} parent=1 // pred_fallthru
      _
    // Predicated region
    $region70: #{tpu_custom_call.1} parent=1 // pred_check
      _
    $region71: #{tpu_custom_call.1} parent=1 // pred_check_branch
      %111 = sbr.rel (0) target = $region73
    $region72: #{tpu_custom_call.1} parent=1 // pred_region
      %112 = dma.done [#allocation6], 2048
    $region73: #{tpu_custom_call.1} parent=1 // pred_fallthru
      _
    // Predicated region
    $region74: #{tpu_custom_call.1} parent=1 // pred_check
      _
    $region75: #{tpu_custom_call.1} parent=1 // pred_check_branch
      %114 = sbr.rel (0) target = $region77
    $region76: #{tpu_custom_call.1} parent=1 // pred_region
      %115 = dma.done [#allocation9], 2048
    $region77: #{tpu_custom_call.1} parent=1 // pred_fallthru
      _
    // Predicated region
    $region78: #{tpu_custom_call.1} parent=1 // pred_check
      _
    $region79: #{tpu_custom_call.1} parent=1 // pred_check_branch
      %117 = sbr.rel (0) target = $region81
    $region80: #{tpu_custom_call.1} parent=1 // pred_region
      %118 = dma.done [#allocation9], 2048
    $region81: #{tpu_custom_call.1} parent=1 // pred_fallthru
      _
    %v119 = vld [vmem:[#allocation2] sm:$0xff]
    %v120 = vld [vmem:[#allocation2 + $0x8] sm:$0xff]
    %v121 = vld [vmem:[#allocation5] sm:$0xff]
    %v122 = vld [vmem:[#allocation5 + $0x8] sm:$0xff]
    %v123 = vld [vmem:[#allocation5 + $0x10] sm:$0xff]
    %v124 = vld [vmem:[#allocation5 + $0x18] sm:$0xff]
    %v125 = vld [vmem:[#allocation5 + $0x20] sm:$0xff]
    %v126 = vld [vmem:[#allocation5 + $0x28] sm:$0xff]
    %v127 = vld [vmem:[#allocation5 + $0x30] sm:$0xff]
    %v128 = vld [vmem:[#allocation5 + $0x38] sm:$0xff]
    %v129 = vld [vmem:[#allocation5 + $0x40] sm:$0xff]
    %v130 = vld [vmem:[#allocation5 + $0x48] sm:$0xff]
    %v131 = vld [vmem:[#allocation5 + $0x50] sm:$0xff]
    %v132 = vld [vmem:[#allocation5 + $0x58] sm:$0xff]
    %v133 = vld [vmem:[#allocation5 + $0x60] sm:$0xff]
    %v134 = vld [vmem:[#allocation5 + $0x68] sm:$0xff]
    %v135 = vld [vmem:[#allocation5 + $0x70] sm:$0xff]
    %v136 = vld [vmem:[#allocation5 + $0x78] sm:$0xff]
    %v137 = vld [vmem:[%s2] sm:$0x1]
    %v138 = vld [vmem:[%s3] sm:$0x1]
    %v139 = vld [vmem:[%s4] sm:$0x1]
    %v141 = vlaneseq
    %v142 = vshrl.u32 %v141, 7
    %v143 = vsub.s32 0, %v142
    %v144 = vrot.slane %v137, %v143
    %146 = vmatprep.subr.mxu0 0.0
    %147 = vmatpush1.msra.mxu0 %v121
    %148 = vmatprep.subr.mxu0 0.0
    %149 = vmatpush1.msra.mxu0 %v122
    %150 = vmatprep.subr.mxu0 0.0
    %151 = vmatpush1.msra.mxu0 %v123
    %152 = vmatprep.subr.mxu0 0.0
    %153 = vmatpush1.msra.mxu0 %v124
    %154 = vmatprep.subr.mxu0 0.0
    %155 = vmatpush1.msra.mxu0 %v125
    %156 = vmatprep.subr.mxu0 0.0
    %157 = vmatpush1.msra.mxu0 %v126
    %158 = vmatprep.subr.mxu0 0.0
    %159 = vmatpush1.msra.mxu0 %v127
    %160 = vmatprep.subr.mxu0 0.0
    %161 = vmatpush1.msra.mxu0 %v128
    %162 = vmatprep.subr.mxu0 0.0
    %163 = vmatpush1.msra.mxu0 %v129
    %164 = vmatprep.subr.mxu0 0.0
    %165 = vmatpush1.msra.mxu0 %v130
    %166 = vmatprep.subr.mxu0 0.0
    %167 = vmatpush1.msra.mxu0 %v131
    %168 = vmatprep.subr.mxu0 0.0
    %169 = vmatpush1.msra.mxu0 %v132
    %170 = vmatprep.subr.mxu0 0.0
    %171 = vmatpush1.msra.mxu0 %v133
    %172 = vmatprep.subr.mxu0 0.0
    %173 = vmatpush1.msra.mxu0 %v134
    %174 = vmatprep.subr.mxu0 0.0
    %175 = vmatpush1.msra.mxu0 %v135
    %176 = vmatprep.subr.mxu0 0.0
    %177 = vmatpush1.msra.mxu0 %v136
    %178 = vmatprep.subr.mxu0 0.0
    %179 = vmatpush1.msra.mxu0 0.0
    %180 = vmatprep.subr.mxu0 0.0
    %181 = vmatpush1.msra.mxu0 0.0
    %182 = vmatprep.subr.mxu0 0.0
    %183 = vmatpush1.msra.mxu0 0.0
    %184 = vmatprep.subr.mxu0 0.0
    %185 = vmatpush1.msra.mxu0 0.0
    %186 = vmatprep.subr.mxu0 0.0
    %187 = vmatpush1.msra.mxu0 0.0
    %188 = vmatprep.subr.mxu0 0.0
    %189 = vmatpush1.msra.mxu0 0.0
    %190 = vmatprep.subr.mxu0 0.0
    %191 = vmatpush1.msra.mxu0 0.0
    %192 = vmatprep.subr.mxu0 0.0
    %193 = vmatpush1.msra.mxu0 0.0
    %194 = vmatprep.subr.mxu0 0.0
    %195 = vmatpush1.msra.mxu0 0.0
    %196 = vmatprep.subr.mxu0 0.0
    %197 = vmatpush1.msra.mxu0 0.0
    %198 = vmatprep.subr.mxu0 0.0
    %199 = vmatpush1.msra.mxu0 0.0
    %200 = vmatprep.subr.mxu0 0.0
    %201 = vmatpush1.msra.mxu0 0.0
    %202 = vmatprep.subr.mxu0 0.0
    %203 = vmatpush1.msra.mxu0 0.0
    %204 = vmatprep.subr.mxu0 0.0
    %205 = vmatpush1.msra.mxu0 0.0
    %206 = vmatprep.subr.mxu0 0.0
    %207 = vmatpush1.msra.mxu0 0.0
    %208 = vmatprep.subr.mxu0 0.0
    %209 = vmatpush1.msra.mxu0 0.0
    %210 = vmatprep.mubr.f32.mxu0 0.0
    %211 = vmatmul.mubr.f32.gmra.mrb[0].mxu0 %v119
    %v212 = vpop.f32.mrb[0].mxu0
    %v213 = vadd.f32 %v144, %v212
    %v214 = vpop.f32.mrb[0].mxu0
    %215 = vmatprep.mubr.f32.mxu0 0.0
    %216 = vmatmul.mubr.f32.gmra.mrb[0].mxu0 %v120
    %v217 = vpop.f32.mrb[0].mxu0
    %v218 = vadd.f32 %v144, %v217
    %v219 = vpop.f32.mrb[0].mxu0
    %220 = vdwg.mxu0
    %v221 = vmax.f32 %v213, 0.0
    %v222 = vmax.f32 %v218, 0.0
    %v223 = vadd.f32 %v221, %v222
    %v224 = vrot.slane %v223, 4
    %v225 = vadd.f32 %v223, %v224
    %v226 = vrot.slane %v225, 2
    %v227 = vadd.f32 %v225, %v226
    %v228 = vrot.slane %v227, 1
    %v229 = vadd.f32 %v227, %v228
    %v230 = vrcp.pop 16.0
    %v231 = vmul.f32 %v229, %v230
    %v232 = vsub.f32 %v221, %v231
    %v233 = vsub.f32 %v222, %v231
    %v234 = vmul.f32 %v232, %v232
    %v235 = vmul.f32 %v233, %v233
    %v236 = vadd.f32 %v234, %v235
    %v237 = vrot.slane %v236, 4
    %v238 = vadd.f32 %v236, %v237
    %v239 = vrot.slane %v238, 2
    %v240 = vadd.f32 %v238, %v239
    %v241 = vrot.slane %v240, 1
    %v242 = vadd.f32 %v240, %v241
    %v243 = vmul.f32 %v242, %v230
    %v244 = vadd.f32 %v243, 1e-05
    %v245 = vrsqrt.pop %v244
    %v246 = vmul.f32 %v138, %v245
    %v248 = vlaneseq
    %v249 = vshrl.u32 %v248, 7
    %v250 = vsub.s32 0, %v249
    %v251 = vrot.slane %v246, %v250
    %v253 = vmul.f32 %v232, %v251
    %v254 = vmul.f32 %v233, %v251
    %v256 = vlaneseq
    %v257 = vshrl.u32 %v256, 7
    %v258 = vsub.s32 0, %v257
    %v259 = vrot.slane %v139, %v258
    %v261 = vadd.f32 %v253, %v259
    %v262 = vadd.f32 %v254, %v259
    %v263 = vld [vmem:[#allocation7] sm:$0xff]
    %v264 = vld [vmem:[#allocation7 + $0x8] sm:$0xff]
    %v265 = vld [vmem:[#allocation7 + $0x10] sm:$0xff]
    %v266 = vld [vmem:[#allocation7 + $0x18] sm:$0xff]
    %v267 = vld [vmem:[#allocation7 + $0x20] sm:$0xff]
    %v268 = vld [vmem:[#allocation7 + $0x28] sm:$0xff]
    %v269 = vld [vmem:[#allocation7 + $0x30] sm:$0xff]
    %v270 = vld [vmem:[#allocation7 + $0x38] sm:$0xff]
    %v271 = vld [vmem:[#allocation7 + $0x40] sm:$0xff]
    %v272 = vld [vmem:[#allocation7 + $0x48] sm:$0xff]
    %v273 = vld [vmem:[#allocation7 + $0x50] sm:$0xff]
    %v274 = vld [vmem:[#allocation7 + $0x58] sm:$0xff]
    %v275 = vld [vmem:[#allocation7 + $0x60] sm:$0xff]
    %v276 = vld [vmem:[#allocation7 + $0x68] sm:$0xff]
    %v277 = vld [vmem:[#allocation7 + $0x70] sm:$0xff]
    %v278 = vld [vmem:[#allocation7 + $0x78] sm:$0xff]
    %v279 = vld [vmem:[%s6] sm:$0x1]
    %v280 = vld [vmem:[%s7] sm:$0x1]
    %v281 = vld [vmem:[%s8] sm:$0x1]
    %v283 = vlaneseq
    %v284 = vshrl.u32 %v283, 7
    %v285 = vsub.s32 0, %v284
    %v286 = vrot.slane %v279, %v285
    %288 = vmatprep.subr.mxu0 0.0
    %289 = vmatpush1.msra.mxu0 %v263
    %290 = vmatprep.subr.mxu0 0.0
    %291 = vmatpush1.msra.mxu0 %v264
    %292 = vmatprep.subr.mxu0 0.0
    %293 = vmatpush1.msra.mxu0 %v265
    %294 = vmatprep.subr.mxu0 0.0
    %295 = vmatpush1.msra.mxu0 %v266
    %296 = vmatprep.subr.mxu0 0.0
    %297 = vmatpush1.msra.mxu0 %v267
    %298 = vmatprep.subr.mxu0 0.0
    %299 = vmatpush1.msra.mxu0 %v268
    %300 = vmatprep.subr.mxu0 0.0
    %301 = vmatpush1.msra.mxu0 %v269
    %302 = vmatprep.subr.mxu0 0.0
    %303 = vmatpush1.msra.mxu0 %v270
    %304 = vmatprep.subr.mxu0 0.0
    %305 = vmatpush1.msra.mxu0 %v271
    %306 = vmatprep.subr.mxu0 0.0
    %307 = vmatpush1.msra.mxu0 %v272
    %308 = vmatprep.subr.mxu0 0.0
    %309 = vmatpush1.msra.mxu0 %v273
    %310 = vmatprep.subr.mxu0 0.0
    %311 = vmatpush1.msra.mxu0 %v274
    %312 = vmatprep.subr.mxu0 0.0
    %313 = vmatpush1.msra.mxu0 %v275
    %314 = vmatprep.subr.mxu0 0.0
    %315 = vmatpush1.msra.mxu0 %v276
    %316 = vmatprep.subr.mxu0 0.0
    %317 = vmatpush1.msra.mxu0 %v277
    %318 = vmatprep.subr.mxu0 0.0
    %319 = vmatpush1.msra.mxu0 %v278
    %320 = vmatprep.subr.mxu0 0.0
    %321 = vmatpush1.msra.mxu0 0.0
    %322 = vmatprep.subr.mxu0 0.0
    %323 = vmatpush1.msra.mxu0 0.0
    %324 = vmatprep.subr.mxu0 0.0
    %325 = vmatpush1.msra.mxu0 0.0
    %326 = vmatprep.subr.mxu0 0.0
    %327 = vmatpush1.msra.mxu0 0.0
    %328 = vmatprep.subr.mxu0 0.0
    %329 = vmatpush1.msra.mxu0 0.0
    %330 = vmatprep.subr.mxu0 0.0
    %331 = vmatpush1.msra.mxu0 0.0
    %332 = vmatprep.subr.mxu0 0.0
    %333 = vmatpush1.msra.mxu0 0.0
    %334 = vmatprep.subr.mxu0 0.0
    %335 = vmatpush1.msra.mxu0 0.0
    %336 = vmatprep.subr.mxu0 0.0
    %337 = vmatpush1.msra.mxu0 0.0
    %338 = vmatprep.subr.mxu0 0.0
    %339 = vmatpush1.msra.mxu0 0.0
    %340 = vmatprep.subr.mxu0 0.0
    %341 = vmatpush1.msra.mxu0 0.0
    %342 = vmatprep.subr.mxu0 0.0
    %343 = vmatpush1.msra.mxu0 0.0
    %344 = vmatprep.subr.mxu0 0.0
    %345 = vmatpush1.msra.mxu0 0.0
    %346 = vmatprep.subr.mxu0 0.0
    %347 = vmatpush1.msra.mxu0 0.0
    %348 = vmatprep.subr.mxu0 0.0
    %349 = vmatpush1.msra.mxu0 0.0
    %350 = vmatprep.subr.mxu0 0.0
    %351 = vmatpush1.msra.mxu0 0.0
    %352 = vmatprep.mubr.f32.mxu0 0.0
    %353 = vmatmul.mubr.f32.gmra.mrb[0].mxu0 %v261
    %v354 = vpop.f32.mrb[0].mxu0
    %v355 = vadd.f32 %v286, %v354
    %v356 = vpop.f32.mrb[0].mxu0
    %357 = vmatprep.mubr.f32.mxu0 0.0
    %358 = vmatmul.mubr.f32.gmra.mrb[0].mxu0 %v262
    %v359 = vpop.f32.mrb[0].mxu0
    %v360 = vadd.f32 %v286, %v359
    %v361 = vpop.f32.mrb[0].mxu0
    %362 = vdwg.mxu0
    %v363 = vmax.f32 %v355, 0.0
    %v364 = vmax.f32 %v360, 0.0
    %v365 = vadd.f32 %v363, %v364
    %v366 = vrot.slane %v365, 4
    %v367 = vadd.f32 %v365, %v366
    %v368 = vrot.slane %v367, 2
    %v369 = vadd.f32 %v367, %v368
    %v370 = vrot.slane %v369, 1
    %v371 = vadd.f32 %v369, %v370
    %v372 = vmul.f32 %v371, %v230
    %v373 = vsub.f32 %v363, %v372
    %v374 = vsub.f32 %v364, %v372
    %v375 = vmul.f32 %v373, %v373
    %v376 = vmul.f32 %v374, %v374
    %v377 = vadd.f32 %v375, %v376
    %v378 = vrot.slane %v377, 4
    %v379 = vadd.f32 %v377, %v378
    %v380 = vrot.slane %v379, 2
    %v381 = vadd.f32 %v379, %v380
    %v382 = vrot.slane %v381, 1
    %v383 = vadd.f32 %v381, %v382
    %v384 = vmul.f32 %v383, %v230
    %v385 = vadd.f32 %v384, 1e-05
    %v386 = vrsqrt.pop %v385
    %v387 = vmul.f32 %v280, %v386
    %v389 = vlaneseq
    %v390 = vshrl.u32 %v389, 7
    %v391 = vsub.s32 0, %v390
    %v392 = vrot.slane %v387, %v391
    %v394 = vmul.f32 %v373, %v392
    %v395 = vmul.f32 %v374, %v392
    %v397 = vlaneseq
    %v398 = vshrl.u32 %v397, 7
    %v399 = vsub.s32 0, %v398
    %v400 = vrot.slane %v281, %v399
    %v402 = vadd.f32 %v394, %v400
    %v403 = vadd.f32 %v395, %v400
    %v404 = vld [vmem:[#allocation8] sm:$0xff]
    %v405 = vld [vmem:[#allocation8 + $0x8] sm:$0xff]
    %v406 = vld [vmem:[#allocation8 + $0x10] sm:$0xff]
    %v407 = vld [vmem:[#allocation8 + $0x18] sm:$0xff]
    %v408 = vld [vmem:[#allocation8 + $0x20] sm:$0xff]
    %v409 = vld [vmem:[#allocation8 + $0x28] sm:$0xff]
    %v410 = vld [vmem:[#allocation8 + $0x30] sm:$0xff]
    %v411 = vld [vmem:[#allocation8 + $0x38] sm:$0xff]
    %v412 = vld [vmem:[#allocation8 + $0x40] sm:$0xff]
    %v413 = vld [vmem:[#allocation8 + $0x48] sm:$0xff]
    %v414 = vld [vmem:[#allocation8 + $0x50] sm:$0xff]
    %v415 = vld [vmem:[#allocation8 + $0x58] sm:$0xff]
    %v416 = vld [vmem:[#allocation8 + $0x60] sm:$0xff]
    %v417 = vld [vmem:[#allocation8 + $0x68] sm:$0xff]
    %v418 = vld [vmem:[#allocation8 + $0x70] sm:$0xff]
    %v419 = vld [vmem:[#allocation8 + $0x78] sm:$0xff]
    %v420 = vld [vmem:[%s10] sm:$0x1]
    %v421 = vld [vmem:[%s11] sm:$0x1]
    %v422 = vld [vmem:[%s12] sm:$0x1]
    %v424 = vlaneseq
    %v425 = vshrl.u32 %v424, 7
    %v426 = vsub.s32 0, %v425
    %v427 = vrot.slane %v420, %v426
    %429 = vmatprep.subr.mxu0 0.0
    %430 = vmatpush1.msra.mxu0 %v404
    %431 = vmatprep.subr.mxu0 0.0
    %432 = vmatpush1.msra.mxu0 %v405
    %433 = vmatprep.subr.mxu0 0.0
    %434 = vmatpush1.msra.mxu0 %v406
    %435 = vmatprep.subr.mxu0 0.0
    %436 = vmatpush1.msra.mxu0 %v407
    %437 = vmatprep.subr.mxu0 0.0
    %438 = vmatpush1.msra.mxu0 %v408
    %439 = vmatprep.subr.mxu0 0.0
    %440 = vmatpush1.msra.mxu0 %v409
    %441 = vmatprep.subr.mxu0 0.0
    %442 = vmatpush1.msra.mxu0 %v410
    %443 = vmatprep.subr.mxu0 0.0
    %444 = vmatpush1.msra.mxu0 %v411
    %445 = vmatprep.subr.mxu0 0.0
    %446 = vmatpush1.msra.mxu0 %v412
    %447 = vmatprep.subr.mxu0 0.0
    %448 = vmatpush1.msra.mxu0 %v413
    %449 = vmatprep.subr.mxu0 0.0
    %450 = vmatpush1.msra.mxu0 %v414
    %451 = vmatprep.subr.mxu0 0.0
    %452 = vmatpush1.msra.mxu0 %v415
    %453 = vmatprep.subr.mxu0 0.0
    %454 = vmatpush1.msra.mxu0 %v416
    %455 = vmatprep.subr.mxu0 0.0
    %456 = vmatpush1.msra.mxu0 %v417
    %457 = vmatprep.subr.mxu0 0.0
    %458 = vmatpush1.msra.mxu0 %v418
    %459 = vmatprep.subr.mxu0 0.0
    %460 = vmatpush1.msra.mxu0 %v419
    %461 = vmatprep.subr.mxu0 0.0
    %462 = vmatpush1.msra.mxu0 0.0
    %463 = vmatprep.subr.mxu0 0.0
    %464 = vmatpush1.msra.mxu0 0.0
    %465 = vmatprep.subr.mxu0 0.0
    %466 = vmatpush1.msra.mxu0 0.0
    %467 = vmatprep.subr.mxu0 0.0
    %468 = vmatpush1.msra.mxu0 0.0
    %469 = vmatprep.subr.mxu0 0.0
    %470 = vmatpush1.msra.mxu0 0.0
    %471 = vmatprep.subr.mxu0 0.0
    %472 = vmatpush1.msra.mxu0 0.0
    %473 = vmatprep.subr.mxu0 0.0
    %474 = vmatpush1.msra.mxu0 0.0
    %475 = vmatprep.subr.mxu0 0.0
    %476 = vmatpush1.msra.mxu0 0.0
    %477 = vmatprep.subr.mxu0 0.0
    %478 = vmatpush1.msra.mxu0 0.0
    %479 = vmatprep.subr.mxu0 0.0
    %480 = vmatpush1.msra.mxu0 0.0
    %481 = vmatprep.subr.mxu0 0.0
    %482 = vmatpush1.msra.mxu0 0.0
    %483 = vmatprep.subr.mxu0 0.0
    %484 = vmatpush1.msra.mxu0 0.0
    %485 = vmatprep.subr.mxu0 0.0
    %486 = vmatpush1.msra.mxu0 0.0
    %487 = vmatprep.subr.mxu0 0.0
    %488 = vmatpush1.msra.mxu0 0.0
    %489 = vmatprep.subr.mxu0 0.0
    %490 = vmatpush1.msra.mxu0 0.0
    %491 = vmatprep.subr.mxu0 0.0
    %492 = vmatpush1.msra.mxu0 0.0
    %493 = vmatprep.mubr.f32.mxu0 0.0
    %494 = vmatmul.mubr.f32.gmra.mrb[0].mxu0 %v402
    %v495 = vpop.f32.mrb[0].mxu0
    %v496 = vadd.f32 %v427, %v495
    %v497 = vpop.f32.mrb[0].mxu0
    %498 = vmatprep.mubr.f32.mxu0 0.0
    %499 = vmatmul.mubr.f32.gmra.mrb[0].mxu0 %v403
    %v500 = vpop.f32.mrb[0].mxu0
    %v501 = vadd.f32 %v427, %v500
    %v502 = vpop.f32.mrb[0].mxu0
    %503 = vdwg.mxu0
    %v504 = vmax.f32 %v496, 0.0
    %v505 = vmax.f32 %v501, 0.0
    %v506 = vadd.f32 %v504, %v505
    %v507 = vrot.slane %v506, 4
    %v508 = vadd.f32 %v506, %v507
    %v509 = vrot.slane %v508, 2
    %v510 = vadd.f32 %v508, %v509
    %v511 = vrot.slane %v510, 1
    %v512 = vadd.f32 %v510, %v511
    %v513 = vmul.f32 %v512, %v230
    %v514 = vsub.f32 %v504, %v513
    %v515 = vsub.f32 %v505, %v513
    %v516 = vmul.f32 %v514, %v514
    %v517 = vmul.f32 %v515, %v515
    %v518 = vadd.f32 %v516, %v517
    %v519 = vrot.slane %v518, 4
    %v520 = vadd.f32 %v518, %v519
    %v521 = vrot.slane %v520, 2
    %v522 = vadd.f32 %v520, %v521
    %v523 = vrot.slane %v522, 1
    %v524 = vadd.f32 %v522, %v523
    %v525 = vmul.f32 %v524, %v230
    %v526 = vadd.f32 %v525, 1e-05
    %v527 = vrsqrt.pop %v526
    %v528 = vmul.f32 %v421, %v527
    %v530 = vlaneseq
    %v531 = vshrl.u32 %v530, 7
    %v532 = vsub.s32 0, %v531
    %v533 = vrot.slane %v528, %v532
    %v535 = vmul.f32 %v514, %v533
    %v536 = vmul.f32 %v515, %v533
    %v538 = vlaneseq
    %v539 = vshrl.u32 %v538, 7
    %v540 = vsub.s32 0, %v539
    %v541 = vrot.slane %v422, %v540
    %v543 = vadd.f32 %v535, %v541
    %v544 = vadd.f32 %v536, %v541
    %v545 = vld [vmem:[#allocation10] sm:$0xff]
    %v546 = vld [vmem:[#allocation10 + $0x8] sm:$0xff]
    %v547 = vld [vmem:[#allocation10 + $0x10] sm:$0xff]
    %v548 = vld [vmem:[#allocation10 + $0x18] sm:$0xff]
    %v549 = vld [vmem:[#allocation10 + $0x20] sm:$0xff]
    %v550 = vld [vmem:[#allocation10 + $0x28] sm:$0xff]
    %v551 = vld [vmem:[#allocation10 + $0x30] sm:$0xff]
    %v552 = vld [vmem:[#allocation10 + $0x38] sm:$0xff]
    %v553 = vld [vmem:[#allocation10 + $0x40] sm:$0xff]
    %v554 = vld [vmem:[#allocation10 + $0x48] sm:$0xff]
    %v555 = vld [vmem:[#allocation10 + $0x50] sm:$0xff]
    %v556 = vld [vmem:[#allocation10 + $0x58] sm:$0xff]
    %v557 = vld [vmem:[#allocation10 + $0x60] sm:$0xff]
    %v558 = vld [vmem:[#allocation10 + $0x68] sm:$0xff]
    %v559 = vld [vmem:[#allocation10 + $0x70] sm:$0xff]
    %v560 = vld [vmem:[#allocation10 + $0x78] sm:$0xff]
    %v561 = vld [vmem:[%s14] sm:$0x1]
    %v563 = vlaneseq
    %v564 = vshrl.u32 %v563, 7
    %v565 = vsub.s32 0, %v564
    %v566 = vrot.slane %v561, %v565
    %568 = vmatprep.subr.mxu0 0.0
    %569 = vmatpush1.msra.mxu0 %v545
    %570 = vmatprep.subr.mxu0 0.0
    %571 = vmatpush1.msra.mxu0 %v546
    %572 = vmatprep.subr.mxu0 0.0
    %573 = vmatpush1.msra.mxu0 %v547
    %574 = vmatprep.subr.mxu0 0.0
    %575 = vmatpush1.msra.mxu0 %v548
    %576 = vmatprep.subr.mxu0 0.0
    %577 = vmatpush1.msra.mxu0 %v549
    %578 = vmatprep.subr.mxu0 0.0
    %579 = vmatpush1.msra.mxu0 %v550
    %580 = vmatprep.subr.mxu0 0.0
    %581 = vmatpush1.msra.mxu0 %v551
    %582 = vmatprep.subr.mxu0 0.0
    %583 = vmatpush1.msra.mxu0 %v552
    %584 = vmatprep.subr.mxu0 0.0
    %585 = vmatpush1.msra.mxu0 %v553
    %586 = vmatprep.subr.mxu0 0.0
    %587 = vmatpush1.msra.mxu0 %v554
    %588 = vmatprep.subr.mxu0 0.0
    %589 = vmatpush1.msra.mxu0 %v555
    %590 = vmatprep.subr.mxu0 0.0
    %591 = vmatpush1.msra.mxu0 %v556
    %592 = vmatprep.subr.mxu0 0.0
    %593 = vmatpush1.msra.mxu0 %v557
    %594 = vmatprep.subr.mxu0 0.0
    %595 = vmatpush1.msra.mxu0 %v558
    %596 = vmatprep.subr.mxu0 0.0
    %597 = vmatpush1.msra.mxu0 %v559
    %598 = vmatprep.subr.mxu0 0.0
    %599 = vmatpush1.msra.mxu0 %v560
    %600 = vmatprep.subr.mxu0 0.0
    %601 = vmatpush1.msra.mxu0 0.0
    %602 = vmatprep.subr.mxu0 0.0
    %603 = vmatpush1.msra.mxu0 0.0
    %604 = vmatprep.subr.mxu0 0.0
    %605 = vmatpush1.msra.mxu0 0.0
    %606 = vmatprep.subr.mxu0 0.0
    %607 = vmatpush1.msra.mxu0 0.0
    %608 = vmatprep.subr.mxu0 0.0
    %609 = vmatpush1.msra.mxu0 0.0
    %610 = vmatprep.subr.mxu0 0.0
    %611 = vmatpush1.msra.mxu0 0.0
    %612 = vmatprep.subr.mxu0 0.0
    %613 = vmatpush1.msra.mxu0 0.0
    %614 = vmatprep.subr.mxu0 0.0
    %615 = vmatpush1.msra.mxu0 0.0
    %616 = vmatprep.subr.mxu0 0.0
    %617 = vmatpush1.msra.mxu0 0.0
    %618 = vmatprep.subr.mxu0 0.0
    %619 = vmatpush1.msra.mxu0 0.0
    %620 = vmatprep.subr.mxu0 0.0
    %621 = vmatpush1.msra.mxu0 0.0
    %622 = vmatprep.subr.mxu0 0.0
    %623 = vmatpush1.msra.mxu0 0.0
    %624 = vmatprep.subr.mxu0 0.0
    %625 = vmatpush1.msra.mxu0 0.0
    %626 = vmatprep.subr.mxu0 0.0
    %627 = vmatpush1.msra.mxu0 0.0
    %628 = vmatprep.subr.mxu0 0.0
    %629 = vmatpush1.msra.mxu0 0.0
    %630 = vmatprep.subr.mxu0 0.0
    %631 = vmatpush1.msra.mxu0 0.0
    %632 = vmatprep.mubr.f32.mxu0 0.0
    %633 = vmatmul.mubr.f32.gmra.mrb[0].mxu0 %v543
    %v634 = vpop.f32.mrb[0].mxu0
    %v635 = vadd.f32 %v566, %v634
    %v636 = vpop.f32.mrb[0].mxu0
    %637 = vmatprep.mubr.f32.mxu0 0.0
    %638 = vmatmul.mubr.f32.gmra.mrb[0].mxu0 %v544
    %v639 = vpop.f32.mrb[0].mxu0
    %v640 = vadd.f32 %v566, %v639
    %v641 = vpop.f32.mrb[0].mxu0
    %642 = vdwg.mxu0
    %643 = vst [vmem:[#allocation11] sm:$0xff] %v635
    %644 = vst [vmem:[#allocation11 + $0x8] sm:$0xff] %v640
    // Predicated region
    $region82: #{tpu_custom_call.1} parent=1 // pred_check
      _
    $region83: #{tpu_custom_call.1} parent=1 // pred_check_branch
      %646 = sbr.rel (0) target = $region85
    $region84: #{tpu_custom_call.1} parent=1 // pred_region
      %s648 = ssub.s32 256, 256
      %649 = vsyncadd [#allocation4], %s648
      %s650 = sshll.u32 [#allocation11], 4
      %s651 = int_to_ptr.vmem [resolvable:$true] %s650
      %656 = dma.vmem_to_hbm [thread:$0]  %s651, 256, %s15, [#allocation4], 128, 128, 8
    $region85: #{tpu_custom_call.1} parent=1 // pred_fallthru
      _
    // Predicated region
    $region86: #{tpu_custom_call.1} parent=1 // pred_check
      _
    $region87: #{tpu_custom_call.1} parent=1 // pred_check_branch
      %658 = sbr.rel (0) target = $region89
    $region88: #{tpu_custom_call.1} parent=1 // pred_region
      %659 = dma.done [#allocation4], 256
    $region89: #{tpu_custom_call.1} parent=1 // pred_fallthru
      _
    %660 = vsyncpa [#allocation3], 1
    %661 = vsyncpa [#allocation6], 1
    %662 = vsyncpa [#allocation9], 1
    %663 = vsyncpa [#allocation4], 1

</llo_original>
